<compile_context>
chip_gen: v5e
topology: v5e:2x2
jax: 0.10.0
libtpu: 0.0.40
codegen_flags: <defaults>
</compile_context>

<pallas_src>
import functools
import numpy as np
import jax
import jax.numpy as jnp
from jax import lax
from jax.experimental import pallas as pl
from jax.experimental.pallas import tpu as pltpu


_HALO = 16   # sublane-aligned halo rows supplied on each side of a tile (only 3 are used)


def _conv_prewav_kernel(x_ref, h_ref, w1_ref, w2_ref, b1_ref, b2_ref, o_ref, *, TL, P, L_total):
    """One (batch, length-tile) grid step.

    x_ref : (1, TL, Cin)         bf16  non-overlapping input tile (positions [t*TL, t*TL+TL))
    h_ref : (1, 1, 2*HALO, Cin)  bf16  halo rows [t*TL-HALO, t*TL) and [t*TL+TL, t*TL+TL+HALO)
    w1_ref: (3*Cin,  Cout)       bf16  conv1 weight in im2col layout, BN1 scale folded in
    w2_ref: (3*Cout, Cout)       bf16  conv2 (dilation 2) weight in im2col layout, BN2 scale folded
    b1_ref, b2_ref: (1, Cout)    f32   folded BN shifts
    o_ref : (1, Cout, TO)              max-pooled tile, channel-major (NCL), lane-dense along TO
    """
    t = pl.program_id(1)
    halo = h_ref[0, 0]                                                     # (2*HALO, Cin)
    # Stitched window over input positions [t*TL - HALO, t*TL + TL + HALO).  All pieces are
    # multiples of the bf16 sublane tiling, so this is a cheap aligned stack (no big shift).
    xw = jnp.concatenate([halo[:_HALO], x_ref[0], halo[_HALO:]], axis=0)   # (TL+2H, Cin)

    # conv1 (k=3, p=1) as a single im2col matmul, evaluated with a +/-2 halo of conv positions
    # so conv2's dilated taps are plain slices.  Window row (HALO-3+q+k) == position t*TL-3+q+k.
    lo = _HALO - 3
    x_im = jnp.concatenate([xw[lo:lo + TL + 4],
                            xw[lo + 1:lo + TL + 5],
                            xw[lo + 2:lo + TL + 6]], axis=1)               # (TL+4, 3Cin)
    h1 = jnp.dot(x_im, w1_ref[...], preferred_element_type=jnp.float32)    # (TL+4, Cout)
    h1 = jnp.maximum(h1 + b1_ref[...], 0.0)

    # PyTorch's conv2 zero-pads its *input* (post BN1/ReLU): halo rows whose global position
    # falls outside [0, L) must be literal zeros, not relu(bn1(0)).
    gpos = t * TL - 2 + lax.broadcasted_iota(jnp.int32, (TL + 4, 1), 0)
    h1 = jnp.where((gpos >= 0) & (gpos < L_total), h1, 0.0).astype(jnp.bfloat16)

    # conv2 (k=3, dilation=2, p=2) as a single im2col matmul over the haloed h1.
    h1_im = jnp.concatenate([h1[0:TL], h1[2:TL + 2], h1[4:TL + 4]], axis=1)  # (TL, 3Cout)
    h2 = jnp.dot(h1_im, w2_ref[...], preferred_element_type=jnp.float32)     # (TL, Cout)
    h2 = jnp.maximum(h2 + b2_ref[...], 0.0)

    # max_pool1d(kernel_size=P, stride=P), then transpose the pooled tile to channel-major with
    # a tiny MXU identity matmul (keeps the store lane-dense along TO; the MXU has slack here).
    cout = h2.shape[-1]
    m = jnp.max(h2.reshape(TL // P, P, cout), axis=1)                        # (TO, Cout) f32
    ident = (lax.broadcasted_iota(jnp.int32, (cout, cout), 0) ==
             lax.broadcasted_iota(jnp.int32, (cout, cout), 1)).astype(jnp.bfloat16)
    m_t = lax.dot_general(ident, m.astype(jnp.bfloat16),
                          dimension_numbers=(((1,), (1,)), ((), ())),
                          preferred_element_type=jnp.float32)                # (Cout, TO)
    o_ref[0] = m_t.astype(o_ref.dtype)


def conv_prewav_block(x, w1, w2, bn1, bn2, pool_size, *, tile_len=32768, out_dtype=None):
    """x: (B, C_in, L) in PyTorch NCL layout. Returns (B, C_out, L // pool_size) in out_dtype
    (defaults to x.dtype; pass jnp.bfloat16 to halve the dominant output HBM stream)."""
    B, Cin, L = x.shape
    Cout = w1.shape[0]
    P = int(pool_size)
    Lout = L // P                              # MaxPool1d floors, dropping the remainder
    if out_dtype is None:
        out_dtype = x.dtype
    eps = 1e-5
    LANE = 128

    # ---- choose the length tile from the real (lane-padded) VMEM footprint ----
    def _lanepad(n):
        return -(-n // LANE) * LANE

    out_isz = jnp.dtype(out_dtype).itemsize
    bytes_per_row = (                          # rough VMEM bytes per conv position of a tile
        2 * 2 * _lanepad(Cin)                  #   input block (bf16, double buffered)
        + 2 * _lanepad(Cin)                    #   stitched window (bf16)
        + 2 * _lanepad(3 * Cin)                #   x_im (bf16)
        + 4 * _lanepad(Cout)                   #   h1 (f32)
        + 2 * _lanepad(Cout)                   #   h1 (bf16)
        + 2 * _lanepad(3 * Cout)               #   h1_im (bf16)
        + 4 * _lanepad(Cout)                   #   h2 (f32)
        + 4 * 8 * _lanepad(Cout) // P          #   pooling reshape relayout temp (sublane padded)
        + 4 * _lanepad(Cout) // P              #   pooled tile (f32)
        + (4 + 2 * out_isz) * Cout // P        #   transposed tile + out block (2 buffers)
    )
    try:
        info = pltpu.get_tpu_info()
        vmem_cap = int(getattr(info, "vmem_capacity_bytes", 0)) or (64 << 20)
    except Exception:                          # no TPU info available: assume smallest VMEM (v7x)
        vmem_cap = 64 << 20
    vmem_limit = min(int(vmem_cap * 0.9), 112 << 20)
    vmem_budget = vmem_limit // 2              # headroom for Mosaic scratch & estimate error

    if Lout < LANE:
        TO, NT = Lout, 1                       # tiny input: one tile, blocks equal full dims
    else:
        TO_req = max(LANE, int(tile_len) // P)
        TO_cap = max(LANE, vmem_budget // (bytes_per_row * P))
        TO = (min(TO_req, TO_cap) // LANE) * LANE
        TO = min(TO, -(-Lout // LANE) * LANE)
        NT = -(-Lout // TO)
        if B * NT < 2 and Lout >= 2 * LANE:
            # keep at least two grid steps so a two-TensorCore chip (v7x) is not half idle
            TO = max(LANE, (Lout // 2 // LANE) * LANE)
            NT = -(-Lout // TO)
    TL = TO * P
    Lp = NT * TL

    # ---- fold BN (eval mode) into the conv weights / a per-channel shift ----
    def fold(bn):
        gamma, beta, mean, var = bn
        scale = gamma / jnp.sqrt(var + eps)
        shift = beta - mean * scale
        return scale.astype(jnp.float32), shift.reshape(1, -1).astype(jnp.float32)

    s1, b1 = fold(bn1)
    s2, b2 = fold(bn2)
    # (Cout, Cin, K) -> (K, Cin, Cout) -> (K*Cin, Cout), BN scale folded, bf16 for the MXU
    w1_im = (jnp.transpose(w1, (2, 1, 0)) * s1).reshape(3 * Cin, Cout).astype(jnp.bfloat16)
    w2_im = (jnp.transpose(w2, (2, 1, 0)) * s2).reshape(3 * Cout, Cout).astype(jnp.bfloat16)

    # ---- main input: NCL -> NLC, pad/crop to NT*TL, bf16 (one fused pass, no window gather) ----
    x_nlc = jnp.transpose(x, (0, 2, 1))                                  # (B, L, Cin)
    if Lp >= L:
        x_main = jnp.pad(x_nlc, ((0, 0), (0, Lp - L), (0, 0)))
    else:                                                                # remainder samples live
        x_main = x_nlc[:, :Lp, :]                                        # only in the halo input
    x_main = x_main.astype(jnp.bfloat16)                                 # (B, Lp, Cin)

    # ---- tiny halo side-input: 16 rows left + 16 rows right of every tile ----
    t0 = jnp.arange(NT, dtype=jnp.int32)[:, None] * TL
    off = jnp.arange(_HALO, dtype=jnp.int32)[None, :]
    pos = jnp.concatenate([t0 - _HALO + off, t0 + TL + off], axis=1)     # (NT, 2*HALO)
    valid = (pos >= 0) & (pos < L)
    halo = jnp.take(x, jnp.clip(pos, 0, L - 1).reshape(-1), axis=2)      # (B, Cin, NT*2H)
    halo = halo.reshape(B, Cin, NT, 2 * _HALO)
    halo = jnp.where(valid[None, None], halo, 0.0)
    x_halo = jnp.transpose(halo, (0, 2, 3, 1)).astype(jnp.bfloat16)      # (B, NT, 2H, Cin)

    kernel = functools.partial(_conv_prewav_kernel, TL=TL, P=P, L_total=L)
    out = pl.pallas_call(
        kernel,
        out_shape=jax.ShapeDtypeStruct((B, Cout, Lout), out_dtype),
        grid_spec=pltpu.PrefetchScalarGridSpec(
            num_scalar_prefetch=0,
            grid=(B, NT),
            in_specs=[
                pl.BlockSpec((1, TL, Cin), lambda b, t: (b, t, 0)),
                pl.BlockSpec((1, 1, 2 * _HALO, Cin), lambda b, t: (b, t, 0, 0)),
                pl.BlockSpec((3 * Cin, Cout), lambda b, t: (0, 0)),
                pl.BlockSpec((3 * Cout, Cout), lambda b, t: (0, 0)),
                pl.BlockSpec((1, Cout), lambda b, t: (0, 0)),
                pl.BlockSpec((1, Cout), lambda b, t: (0, 0)),
            ],
            out_specs=pl.BlockSpec((1, Cout, TO), lambda b, t: (b, 0, t)),
        ),
        compiler_params=pltpu.CompilerParams(
            dimension_semantics=("parallel", "parallel"),
            vmem_limit_bytes=int(vmem_limit)),
        cost_estimate=pl.CostEstimate(
            flops=int(2 * B * L * 3 * Cout * (Cin + Cout)),
            transcendentals=0,
            bytes_accessed=int(x_main.size * 2 + x_halo.size * 2 + w1_im.size * 2
                               + w2_im.size * 2 + B * Cout * Lout * out_isz)),
    )(x_main, x_halo, w1_im, w2_im, b1, b2)
    return out


def reference(x, w1, w2, bn1, bn2, pool_size):
    """Pure-JAX f32 reference matching the PyTorch forward (BN in eval mode)."""
    eps = 1e-5

    def conv1d(x, w, dilation, padding):
        return lax.conv_general_dilated(
            x, w, window_strides=(1,), padding=[(padding, padding)],
            rhs_dilation=(dilation,), dimension_numbers=('NCH', 'OIH', 'NCH'))

    def bn(x, params):
        gamma, beta, mean, var = params
        return ((x - mean[None, :, None]) / jnp.sqrt(var[None, :, None] + eps)
                * gamma[None, :, None] + beta[None, :, None])

    h = jax.nn.relu(bn(conv1d(x, w1, 1, 1), bn1))
    h = jax.nn.relu(bn(conv1d(h, w2, 2, 2), bn2))
    B, C, L = h.shape
    P = int(pool_size)
    h = h[:, :, :(L // P) * P].reshape(B, C, L // P, P)
    return jnp.max(h, axis=-1)


def xavier_uniform(key, shape):
    # Conv1d weight (C_out, C_in, K): fan_in = C_in*K, fan_out = C_out*K
    c_out, c_in, k = shape
    bound = float(np.sqrt(6.0 / (c_in * k + c_out * k)))
    return jax.random.uniform(key, shape, jnp.float32, minval=-bound, maxval=bound)


if __name__ == "__main__":
    # --- small smoke test (single tile, non-trivial BN stats) ---
    B, Cin, Cout, L, pool_size = 2, 4, 8, 16, 2
    key = jax.random.PRNGKey(0)
    k1, k2, kx, kb = jax.random.split(key, 4)
    w1 = xavier_uniform(k1, (Cout, Cin, 3))
    w2 = xavier_uniform(k2, (Cout, Cout, 3))
    kb1, kb2, kb3, kb4 = jax.random.split(kb, 4)
    bn1 = (1.0 + 0.1 * jax.random.normal(kb1, (Cout,), jnp.float32),
           0.1 * jax.random.normal(kb2, (Cout,), jnp.float32),
           0.1 * jax.random.normal(kb3, (Cout,), jnp.float32),
           jnp.abs(1.0 + 0.2 * jax.random.normal(kb4, (Cout,), jnp.float32)))
    bn2 = (jnp.ones((Cout,), jnp.float32),
           0.05 * jnp.ones((Cout,), jnp.float32),
           0.05 * jnp.ones((Cout,), jnp.float32),
           0.9 * jnp.ones((Cout,), jnp.float32))
    x = jax.random.normal(kx, (B, Cin, L), jnp.float32)

    out = jax.block_until_ready(conv_prewav_block(x, w1, w2, bn1, bn2, pool_size))
    ref = jax.block_until_ready(reference(x, w1, w2, bn1, bn2, pool_size))
    assert out.shape == (B, Cout, L // pool_size), out.shape
    # bf16 MXU operands with f32 accumulation -> loosen tolerance vs the f32 reference.
    np.testing.assert_allclose(np.asarray(out), np.asarray(ref), rtol=5e-2, atol=5e-2)

    # --- multi-tile test: NT > 1, cross-tile halo stitching, ragged (clipped) last block ---
    B2, Cin2, Cout2, L2, P2 = 1, 1, 64, 1403, 4
    kk = jax.random.split(jax.random.PRNGKey(1), 3)
    w1b = xavier_uniform(kk[0], (Cout2, Cin2, 3))
    w2b = xavier_uniform(kk[1], (Cout2, Cout2, 3))
    ones_c = jnp.ones((Cout2,), jnp.float32)
    zeros_c = jnp.zeros((Cout2,), jnp.float32)
    bn1b = (ones_c, zeros_c, zeros_c, ones_c)
    bn2b = (ones_c, 0.02 * ones_c, 0.05 * ones_c, 0.8 * ones_c)
    x2 = jax.random.normal(kk[2], (B2, Cin2, L2), jnp.float32)

    out2 = jax.block_until_ready(conv_prewav_block(x2, w1b, w2b, bn1b, bn2b, P2))
    ref2 = jax.block_until_ready(reference(x2, w1b, w2b, bn1b, bn2b, P2))
    assert out2.shape == (B2, Cout2, L2 // P2), out2.shape
    np.testing.assert_allclose(np.asarray(out2), np.asarray(ref2), rtol=5e-2, atol=5e-2)

    print("KERNEL_OK")
</pallas_src>

<mosaic_0001>
module attributes {stable_mosaic.version = 11 : i64} {
  func.func @_conv_prewav_kernel(%arg0: i32, %arg1: i32, %arg2: memref<1x16x4xbf16, #tpu.memory_space<vmem>>, %arg3: memref<1x1x32x4xbf16, #tpu.memory_space<vmem>>, %arg4: memref<12x8xbf16, #tpu.memory_space<vmem>>, %arg5: memref<24x8xbf16, #tpu.memory_space<vmem>>, %arg6: memref<1x8xf32, #tpu.memory_space<vmem>>, %arg7: memref<1x8xf32, #tpu.memory_space<vmem>>, %arg8: memref<1x8x8xf32, #tpu.memory_space<vmem>>) attributes {dimension_semantics = [#tpu.dimension_semantics<parallel>, #tpu.dimension_semantics<parallel>], iteration_bounds = array<i64: 2, 1>, scalar_prefetch = 0 : i64, scratch_operands = 0 : i64, tpu.core_type = #tpu.core_type<tc>, window_params = [{transform_indices = @transform_0, window_bounds = array<i64: 1, 16, 4>}, {transform_indices = @transform_1, window_bounds = array<i64: 1, 1, 32, 4>}, {pipeline_mode = #tpu.pipeline_mode<synchronous>, transform_indices = @transform_2, window_bounds = array<i64: 12, 8>}, {pipeline_mode = #tpu.pipeline_mode<synchronous>, transform_indices = @transform_3, window_bounds = array<i64: 24, 8>}, {pipeline_mode = #tpu.pipeline_mode<synchronous>, transform_indices = @transform_4, window_bounds = array<i64: 1, 8>}, {pipeline_mode = #tpu.pipeline_mode<synchronous>, transform_indices = @transform_5, window_bounds = array<i64: 1, 8>}, {transform_indices = @transform_6, window_bounds = array<i64: 1, 8, 8>}]} {
    %c0 = arith.constant 0 : index
    %c0_0 = arith.constant 0 : index
    %c0_1 = arith.constant 0 : index
    %c0_2 = arith.constant 0 : index
    %0 = vector.load %arg3[%c0, %c0_0, %c0_1, %c0_2] : memref<1x1x32x4xbf16, #tpu.memory_space<vmem>>, vector<1x1x32x4xbf16>
    %1 = vector.shape_cast %0 : vector<1x1x32x4xbf16> to vector<32x4xbf16>
    %2 = vector.extract_strided_slice %1 {offsets = [0, 0], sizes = [16, 4], strides = [1, 1]} : vector<32x4xbf16> to vector<16x4xbf16>
    %c0_3 = arith.constant 0 : index
    %c0_4 = arith.constant 0 : index
    %c0_5 = arith.constant 0 : index
    %3 = vector.load %arg2[%c0_3, %c0_4, %c0_5] : memref<1x16x4xbf16, #tpu.memory_space<vmem>>, vector<1x16x4xbf16>
    %4 = vector.shape_cast %3 : vector<1x16x4xbf16> to vector<16x4xbf16>
    %5 = vector.extract_strided_slice %1 {offsets = [16, 0], sizes = [16, 4], strides = [1, 1]} : vector<32x4xbf16> to vector<16x4xbf16>
    %6 = tpu.concatenate %2, %4, %5 in 0 : vector<16x4xbf16>, vector<16x4xbf16>, vector<16x4xbf16> -> vector<48x4xbf16>
    %7 = vector.extract_strided_slice %6 {offsets = [13, 0], sizes = [20, 4], strides = [1, 1]} : vector<48x4xbf16> to vector<20x4xbf16>
    %8 = vector.extract_strided_slice %6 {offsets = [14, 0], sizes = [20, 4], strides = [1, 1]} : vector<48x4xbf16> to vector<20x4xbf16>
    %9 = vector.extract_strided_slice %6 {offsets = [15, 0], sizes = [20, 4], strides = [1, 1]} : vector<48x4xbf16> to vector<20x4xbf16>
    %10 = tpu.concatenate %7, %8, %9 in 1 : vector<20x4xbf16>, vector<20x4xbf16>, vector<20x4xbf16> -> vector<20x12xbf16>
    %c0_6 = arith.constant 0 : index
    %c0_7 = arith.constant 0 : index
    %11 = vector.load %arg4[%c0_6, %c0_7] : memref<12x8xbf16, #tpu.memory_space<vmem>>, vector<12x8xbf16>
    %cst = arith.constant dense<0.000000e+00> : vector<20x8xf32>
    %12 = tpu.matmul %10, %11, %cst {dimension_numbers = #tpu.dot_dimension_numbers<[1], [0], [0], [1], [0, 0, 1, 1], [], []>} : vector<20x12xbf16>, vector<12x8xbf16>, vector<20x8xf32> -> vector<20x8xf32>
    %c0_8 = arith.constant 0 : index
    %c0_9 = arith.constant 0 : index
    %13 = vector.load %arg6[%c0_8, %c0_9] : memref<1x8xf32, #tpu.memory_space<vmem>>, vector<1x8xf32>
    %14 = vector.broadcast %13 : vector<1x8xf32> to vector<20x8xf32>
    %15 = arith.addf %12, %14 : vector<20x8xf32>
    %cst_10 = arith.constant 0.000000e+00 : f32
    %16 = vector.broadcast %cst_10 : f32 to vector<20x8xf32>
    %17 = arith.maximumf %15, %16 : vector<20x8xf32>
    %c16_i32 = arith.constant 16 : i32
    %18 = arith.muli %arg1, %c16_i32 : i32
    %c2_i32 = arith.constant 2 : i32
    %19 = arith.subi %18, %c2_i32 : i32
    %20 = tpu.iota {dimensions = array<i32: 0>} : vector<20x1xi32>
    %21 = vector.broadcast %19 : i32 to vector<20x1xi32>
    %22 = arith.addi %21, %20 : vector<20x1xi32>
    %c0_i32 = arith.constant 0 : i32
    %23 = vector.broadcast %c0_i32 : i32 to vector<20x1xi32>
    %24 = arith.cmpi sge, %22, %23 : vector<20x1xi32>
    %c16_i32_11 = arith.constant 16 : i32
    %25 = vector.broadcast %c16_i32_11 : i32 to vector<20x1xi32>
    %26 = arith.cmpi slt, %22, %25 : vector<20x1xi32>
    %27 = arith.andi %24, %26 : vector<20x1xi1>
    %cst_12 = arith.constant 0.000000e+00 : f32
    %28 = vector.shape_cast %27 : vector<20x1xi1> to vector<20x1xi1>
    %29 = vector.broadcast %28 : vector<20x1xi1> to vector<20x8xi1>
    %30 = vector.broadcast %cst_12 : f32 to vector<20x8xf32>
    %31 = arith.select %29, %17, %30 : vector<20x8xi1>, vector<20x8xf32>
    %32 = arith.truncf %31 : vector<20x8xf32> to vector<20x8xbf16>
    %33 = vector.extract_strided_slice %32 {offsets = [0, 0], sizes = [16, 8], strides = [1, 1]} : vector<20x8xbf16> to vector<16x8xbf16>
    %34 = vector.extract_strided_slice %32 {offsets = [2, 0], sizes = [16, 8], strides = [1, 1]} : vector<20x8xbf16> to vector<16x8xbf16>
    %35 = vector.extract_strided_slice %32 {offsets = [4, 0], sizes = [16, 8], strides = [1, 1]} : vector<20x8xbf16> to vector<16x8xbf16>
    %36 = tpu.concatenate %33, %34, %35 in 1 : vector<16x8xbf16>, vector<16x8xbf16>, vector<16x8xbf16> -> vector<16x24xbf16>
    %c0_13 = arith.constant 0 : index
    %c0_14 = arith.constant 0 : index
    %37 = vector.load %arg5[%c0_13, %c0_14] : memref<24x8xbf16, #tpu.memory_space<vmem>>, vector<24x8xbf16>
    %cst_15 = arith.constant dense<0.000000e+00> : vector<16x8xf32>
    %38 = tpu.matmul %36, %37, %cst_15 {dimension_numbers = #tpu.dot_dimension_numbers<[1], [0], [0], [1], [0, 0, 1, 1], [], []>} : vector<16x24xbf16>, vector<24x8xbf16>, vector<16x8xf32> -> vector<16x8xf32>
    %c0_16 = arith.constant 0 : index
    %c0_17 = arith.constant 0 : index
    %39 = vector.load %arg7[%c0_16, %c0_17] : memref<1x8xf32, #tpu.memory_space<vmem>>, vector<1x8xf32>
    %40 = vector.broadcast %39 : vector<1x8xf32> to vector<16x8xf32>
    %41 = arith.addf %38, %40 : vector<16x8xf32>
    %cst_18 = arith.constant 0.000000e+00 : f32
    %42 = vector.broadcast %cst_18 : f32 to vector<16x8xf32>
    %43 = arith.maximumf %41, %42 : vector<16x8xf32>
    %44 = vector.shape_cast %43 : vector<16x8xf32> to vector<8x2x8xf32>
    %cst_19 = arith.constant dense<0xFF800000> : vector<8x8xf32>
    %45 = vector.multi_reduction <maximumf>, %44, %cst_19 [1] : vector<8x2x8xf32> to vector<8x8xf32>
    %46 = tpu.iota {dimensions = array<i32: 0>} : vector<8x8xi32>
    %47 = tpu.iota {dimensions = array<i32: 1>} : vector<8x8xi32>
    %48 = arith.cmpi eq, %46, %47 : vector<8x8xi32>
    %49 = arith.extui %48 : vector<8x8xi1> to vector<8x8xi32>
    %50 = arith.sitofp %49 : vector<8x8xi32> to vector<8x8xf32>
    %51 = arith.truncf %50 : vector<8x8xf32> to vector<8x8xbf16>
    %52 = arith.truncf %45 : vector<8x8xf32> to vector<8x8xbf16>
    %cst_20 = arith.constant dense<0.000000e+00> : vector<8x8xf32>
    %53 = tpu.matmul %51, %52, %cst_20 {dimension_numbers = #tpu.dot_dimension_numbers<[1], [1], [0], [0], [0, 0, 1, 0], [], []>} : vector<8x8xbf16>, vector<8x8xbf16>, vector<8x8xf32> -> vector<8x8xf32>
    %c0_21 = arith.constant 0 : index
    %c0_22 = arith.constant 0 : index
    %c0_23 = arith.constant 0 : index
    %54 = vector.load %arg8[%c0_21, %c0_22, %c0_23] : memref<1x8x8xf32, #tpu.memory_space<vmem>>, vector<1x8x8xf32>
    %55 = vector.shape_cast %54 : vector<1x8x8xf32> to vector<8x8xf32>
    %56 = vector.shape_cast %53 : vector<8x8xf32> to vector<1x8x8xf32>
    tpu.vector_store %arg8[%c0_21, %c0_22, %c0_23], %56 {strides = array<i32>} : memref<1x8x8xf32, #tpu.memory_space<vmem>>, vector<1x8x8xf32>,
    return
  }
  func.func @transform_0(%arg0: i32, %arg1: i32) -> (i32, i32, i32) {
    %c0_i32 = arith.constant 0 : i32
    %c0_i32_0 = arith.constant 0 : i32
    return %arg0, %arg1, %c0_i32 : i32, i32, i32
  }
  func.func @transform_1(%arg0: i32, %arg1: i32) -> (i32, i32, i32, i32) {
    %c0_i32 = arith.constant 0 : i32
    %c0_i32_0 = arith.constant 0 : i32
    %c0_i32_1 = arith.constant 0 : i32
    return %arg0, %arg1, %c0_i32, %c0_i32_0 : i32, i32, i32, i32
  }
  func.func @transform_2(%arg0: i32, %arg1: i32) -> (i32, i32) {
    %c0_i32 = arith.constant 0 : i32
    %c0_i32_0 = arith.constant 0 : i32
    %c0_i32_1 = arith.constant 0 : i32
    return %c0_i32, %c0_i32_0 : i32, i32
  }
  func.func @transform_3(%arg0: i32, %arg1: i32) -> (i32, i32) {
    %c0_i32 = arith.constant 0 : i32
    %c0_i32_0 = arith.constant 0 : i32
    %c0_i32_1 = arith.constant 0 : i32
    return %c0_i32, %c0_i32_0 : i32, i32
  }
  func.func @transform_4(%arg0: i32, %arg1: i32) -> (i32, i32) {
    %c0_i32 = arith.constant 0 : i32
    %c0_i32_0 = arith.constant 0 : i32
    %c0_i32_1 = arith.constant 0 : i32
    return %c0_i32, %c0_i32_0 : i32, i32
  }
  func.func @transform_5(%arg0: i32, %arg1: i32) -> (i32, i32) {
    %c0_i32 = arith.constant 0 : i32
    %c0_i32_0 = arith.constant 0 : i32
    %c0_i32_1 = arith.constant 0 : i32
    return %c0_i32, %c0_i32_0 : i32, i32
  }
  func.func @transform_6(%arg0: i32, %arg1: i32) -> (i32, i32, i32) {
    %c0_i32 = arith.constant 0 : i32
    %c0_i32_0 = arith.constant 0 : i32
    return %arg0, %c0_i32, %arg1 : i32, i32, i32
  }
}

</mosaic_0001>

<llo_original>
// kernel: tpu_custom_call.1
$region0: #{tpu_custom_call.1}
  #allocation0 [shape = 'u32[]', space=smem, size = 0x4, offset = 0x4, fixed_abs, tag = 'smem constant byte address 0x4 - core index']
  #allocation1 [shape = 'u32[72,128]{1,0:T(1,128)}', space=vmem, size = 0x9000, scoped, tag = 'internal scratch']
  %s0 = inlined_call_operand.vmem [shape: bf16[2,16,4], index: 0, kind: input, shape index: {}]
  %s1 = inlined_call_operand.vmem [shape: bf16[2,1,32,4], index: 1, kind: input, shape index: {}]
  %s2 = inlined_call_operand.vmem [shape: bf16[12,8], index: 2, kind: input, shape index: {}]
  %s3 = inlined_call_operand.vmem [shape: bf16[24,8], index: 3, kind: input, shape index: {}]
  %s4 = inlined_call_operand.vmem [shape: f32[1,8], index: 4, kind: input, shape index: {}]
  %s5 = inlined_call_operand.vmem [shape: f32[1,8], index: 5, kind: input, shape index: {}]
  %s6 = inlined_call_operand.hbm [shape: f32[2,8,8], index: 6, kind: output, shape index: {}]
  %s7 = sld [smem:[#allocation0]]
  $region57: #{tpu_custom_call.1} parent=0
    _
  %s9 = ssub.s32 1, %s7
  %s10 = scalar_select 0, %s9, %s7
  $region1: #{tpu_custom_call.1} parent=0
    #allocation2 [shape = 'u8[8192]{0}', space=vmem, size = 0x2000, scoped, tag = 'output window, operand 0']
    #allocation3 [shape = 's32[2]{0}', space=sflag, size = 0x8, scoped, tag = 'scoped memory for tpu_custom_call.1']
    %11 = vsyncpa [#allocation3], 0
    %s12 = scalar_lea.sflag [#allocation3], 1
    %13 = vsyncpa %s12, 0
    loop: start=0, step=1, limit=4
    $region2: #{tpu_custom_call.1} parent=1 // loop_pre_header
      _
    $region3: #{tpu_custom_call.1} parent=1 // loop_header
      %s15 = sphi 0, %s19
      %p16 = scmp.ge.s32.totalorder %s15, 4
      %s22 = sphi 0, %s34
      %s23 = sphi 0, %s30
      %s24 = sphi 0, %s22
      %s25 = sphi 0, %s23
      %s26 = sphi 0, %s24
      %s27 = sphi 0, %s25
      %s39 = sphi 0, %s41
      %s42 = sphi 0, %s39
      %s43 = sphi 0, %s42
      %s59 = sphi 0, %s43
      %s67 = sphi 0, %s69
      %s70 = sphi 0, %s67
      %s71 = sphi 0, %s70
      %s87 = sphi 0, %s71
      %s91 = sphi 0, %s91
      %s93 = sphi 0, %s91
      %s94 = sphi 0, %s93
      %s108 = sphi 0, %s94
      %s112 = sphi 0, %s112
      %s114 = sphi 0, %s112
      %s115 = sphi 0, %s114
      %s129 = sphi 0, %s115
      %s133 = sphi 0, %s133
      %s135 = sphi 0, %s133
      %s136 = sphi 0, %s135
      %s150 = sphi 0, %s136
      %s154 = sphi 0, %s154
      %s156 = sphi 0, %s154
      %s157 = sphi 0, %s156
      %s171 = sphi 0, %s157
      %s179 = sphi 0, %s181
      %s182 = sphi 0, %s179
      %s183 = sphi 0, %s182
      %s199 = sphi 0, %s183
    $region4: #{tpu_custom_call.1} parent=1 // loop_header_branch
      %18 = sbr.rel (%p16) target = $region8
    $region5: #{tpu_custom_call.1} parent=1 // loop_body
      %s20 = ssub.s32 %s15, 1
      %s21 = ssub.s32 %s15, 2
      %s28 = sadd.s32 1, %s23
      %p29 = scmp.ge.s32.totalorder %s28, 1
      %s30 = scalar_select %p29, 0, %s28
      %s31 = sadd.s32 1, %s22
      %s32 = scalar_select %p29, %s31, %s22
      %p33 = scmp.ge.s32.totalorder %s32, 2
      %s34 = scalar_select %p33, 0, %s32
      %s35 = ssub.s32 %s22, %s34
      %s36 = ssub.s32 %s23, %s30
      %s37 = sor.u32 %s35, %s36
      %p38 = scmp.eq.s32.totalorder %s37, 0
      %s40 = sadd.s32 %s39, 1
      %s41 = scalar_select %p38, %s39, %s40
      %p44 = pneg %p38
      %p45 = scmp.eq.s32.totalorder %s15, 1
      %p46 = por %p44, %p45
      %p47 = scmp.ne.s32.totalorder %s39, %s42
      %p48 = scmp.eq.s32.totalorder %s15, 0
      %p49 = por %p47, %p48
      %p50 = scmp.ne.s32.totalorder %s39, %s42
      %p51 = scmp.eq.s32.totalorder %s20, 1
      %p52 = por %p50, %p51
      %p53 = scmp.ne.s32.totalorder %s42, %s43
      %p54 = scmp.eq.s32.totalorder %s20, 0
      %p55 = por %p53, %p54
      %p56 = scmp.ne.s32.totalorder %s42, %s43
      %p57 = scmp.eq.s32.totalorder %s21, 1
      %p58 = por %p56, %p57
      %p60 = scmp.ne.s32.totalorder %s43, %s59
      %p61 = scmp.eq.s32.totalorder %s21, 0
      %p62 = por %p60, %p61
      %s63 = ssub.s32 %s22, %s34
      %s64 = ssub.s32 %s23, %s30
      %s65 = sor.u32 %s63, %s64
      %p66 = scmp.eq.s32.totalorder %s65, 0
      %s68 = sadd.s32 %s67, 1
      %s69 = scalar_select %p66, %s67, %s68
      %p72 = pneg %p66
      %p73 = scmp.eq.s32.totalorder %s15, 1
      %p74 = por %p72, %p73
      %p75 = scmp.ne.s32.totalorder %s67, %s70
      %p76 = scmp.eq.s32.totalorder %s15, 0
      %p77 = por %p75, %p76
      %p78 = scmp.ne.s32.totalorder %s67, %s70
      %p79 = scmp.eq.s32.totalorder %s20, 1
      %p80 = por %p78, %p79
      %p81 = scmp.ne.s32.totalorder %s70, %s71
      %p82 = scmp.eq.s32.totalorder %s20, 0
      %p83 = por %p81, %p82
      %p84 = scmp.ne.s32.totalorder %s70, %s71
      %p85 = scmp.eq.s32.totalorder %s21, 1
      %p86 = por %p84, %p85
      %p88 = scmp.ne.s32.totalorder %s71, %s87
      %p89 = scmp.eq.s32.totalorder %s21, 0
      %p90 = por %p88, %p89
      %s92 = sadd.s32 %s91, 1
      %p95 = scmp.eq.s32.totalorder %s15, 1
      %p96 = scmp.ne.s32.totalorder %s91, %s93
      %p97 = scmp.eq.s32.totalorder %s15, 0
      %p98 = por %p96, %p97
      %p99 = scmp.ne.s32.totalorder %s91, %s93
      %p100 = scmp.eq.s32.totalorder %s20, 1
      %p101 = por %p99, %p100
      %p102 = scmp.ne.s32.totalorder %s93, %s94
      %p103 = scmp.eq.s32.totalorder %s20, 0
      %p104 = por %p102, %p103
      %p105 = scmp.ne.s32.totalorder %s93, %s94
      %p106 = scmp.eq.s32.totalorder %s21, 1
      %p107 = por %p105, %p106
      %p109 = scmp.ne.s32.totalorder %s94, %s108
      %p110 = scmp.eq.s32.totalorder %s21, 0
      %p111 = por %p109, %p110
      %s113 = sadd.s32 %s112, 1
      %p116 = scmp.eq.s32.totalorder %s15, 1
      %p117 = scmp.ne.s32.totalorder %s112, %s114
      %p118 = scmp.eq.s32.totalorder %s15, 0
      %p119 = por %p117, %p118
      %p120 = scmp.ne.s32.totalorder %s112, %s114
      %p121 = scmp.eq.s32.totalorder %s20, 1
      %p122 = por %p120, %p121
      %p123 = scmp.ne.s32.totalorder %s114, %s115
      %p124 = scmp.eq.s32.totalorder %s20, 0
      %p125 = por %p123, %p124
      %p126 = scmp.ne.s32.totalorder %s114, %s115
      %p127 = scmp.eq.s32.totalorder %s21, 1
      %p128 = por %p126, %p127
      %p130 = scmp.ne.s32.totalorder %s115, %s129
      %p131 = scmp.eq.s32.totalorder %s21, 0
      %p132 = por %p130, %p131
      %s134 = sadd.s32 %s133, 1
      %p137 = scmp.eq.s32.totalorder %s15, 1
      %p138 = scmp.ne.s32.totalorder %s133, %s135
      %p139 = scmp.eq.s32.totalorder %s15, 0
      %p140 = por %p138, %p139
      %p141 = scmp.ne.s32.totalorder %s133, %s135
      %p142 = scmp.eq.s32.totalorder %s20, 1
      %p143 = por %p141, %p142
      %p144 = scmp.ne.s32.totalorder %s135, %s136
      %p145 = scmp.eq.s32.totalorder %s20, 0
      %p146 = por %p144, %p145
      %p147 = scmp.ne.s32.totalorder %s135, %s136
      %p148 = scmp.eq.s32.totalorder %s21, 1
      %p149 = por %p147, %p148
      %p151 = scmp.ne.s32.totalorder %s136, %s150
      %p152 = scmp.eq.s32.totalorder %s21, 0
      %p153 = por %p151, %p152
      %s155 = sadd.s32 %s154, 1
      %p158 = scmp.eq.s32.totalorder %s15, 1
      %p159 = scmp.ne.s32.totalorder %s154, %s156
      %p160 = scmp.eq.s32.totalorder %s15, 0
      %p161 = por %p159, %p160
      %p162 = scmp.ne.s32.totalorder %s154, %s156
      %p163 = scmp.eq.s32.totalorder %s20, 1
      %p164 = por %p162, %p163
      %p165 = scmp.ne.s32.totalorder %s156, %s157
      %p166 = scmp.eq.s32.totalorder %s20, 0
      %p167 = por %p165, %p166
      %p168 = scmp.ne.s32.totalorder %s156, %s157
      %p169 = scmp.eq.s32.totalorder %s21, 1
      %p170 = por %p168, %p169
      %p172 = scmp.ne.s32.totalorder %s157, %s171
      %p173 = scmp.eq.s32.totalorder %s21, 0
      %p174 = por %p172, %p173
      %s175 = ssub.s32 %s22, %s34
      %s176 = ssub.s32 %s23, %s30
      %s177 = sor.u32 %s175, %s176
      %p178 = scmp.eq.s32.totalorder %s177, 0
      %s180 = sadd.s32 %s179, 1
      %s181 = scalar_select %p178, %s179, %s180
      %p184 = pneg %p178
      %p185 = scmp.eq.s32.totalorder %s15, 1
      %p186 = por %p184, %p185
      %p187 = scmp.ne.s32.totalorder %s179, %s182
      %p188 = scmp.eq.s32.totalorder %s15, 0
      %p189 = por %p187, %p188
      %p190 = scmp.ne.s32.totalorder %s179, %s182
      %p191 = scmp.eq.s32.totalorder %s20, 1
      %p192 = por %p190, %p191
      %p193 = scmp.ne.s32.totalorder %s182, %s183
      %p194 = scmp.eq.s32.totalorder %s20, 0
      %p195 = por %p193, %p194
      %p196 = scmp.ne.s32.totalorder %s182, %s183
      %p197 = scmp.eq.s32.totalorder %s21, 1
      %p198 = por %p196, %p197
      %p200 = scmp.ne.s32.totalorder %s183, %s199
      %p201 = scmp.eq.s32.totalorder %s21, 0
      %p202 = por %p200, %p201
      %p203 = scmp.le.s32.totalorder 1, %s15
      %p204 = scmp.lt.s32.totalorder %s15, 3
      %p205 = pnand %p203, %p204
      %p206 = pneg %p205
      // Predicated region
      $region9: #{tpu_custom_call.1} parent=5 // pred_check
        _
      $region10: #{tpu_custom_call.1} parent=5 // pred_check_branch
        %208 = sbr.rel (%p205) target = $region12
      $region11: #{tpu_custom_call.1} parent=5 // pred_region
        %s209 = ssub.s32 %s15, 1
        // Predicated region
        $region13: #{tpu_custom_call.1} parent=11 // pred_check
          %p210 = pneg %p104
        $region14: #{tpu_custom_call.1} parent=11 // pred_check_branch
          %212 = sbr.rel (%p210) target = $region16
        $region15: #{tpu_custom_call.1} parent=11 // pred_region
          _
        $region16: #{tpu_custom_call.1} parent=11 // pred_fallthru
          _
        // Predicated region
        $region17: #{tpu_custom_call.1} parent=11 // pred_check
          %p213 = pneg %p125
        $region18: #{tpu_custom_call.1} parent=11 // pred_check_branch
          %215 = sbr.rel (%p213) target = $region20
        $region19: #{tpu_custom_call.1} parent=11 // pred_region
          _
        $region20: #{tpu_custom_call.1} parent=11 // pred_fallthru
          _
        // Predicated region
        $region21: #{tpu_custom_call.1} parent=11 // pred_check
          %p216 = pneg %p146
        $region22: #{tpu_custom_call.1} parent=11 // pred_check_branch
          %218 = sbr.rel (%p216) target = $region24
        $region23: #{tpu_custom_call.1} parent=11 // pred_region
          _
        $region24: #{tpu_custom_call.1} parent=11 // pred_fallthru
          _
        // Predicated region
        $region25: #{tpu_custom_call.1} parent=11 // pred_check
          %p219 = pneg %p167
        $region26: #{tpu_custom_call.1} parent=11 // pred_check_branch
          %221 = sbr.rel (%p219) target = $region28
        $region27: #{tpu_custom_call.1} parent=11 // pred_region
          _
        $region28: #{tpu_custom_call.1} parent=11 // pred_fallthru
          _
      $region12: #{tpu_custom_call.1} parent=5 // pred_fallthru
        _
      %p222 = scmp.lt.s32.totalorder %s15, 2
      // Predicated region
      $region29: #{tpu_custom_call.1} parent=5 // pred_check
        %p223 = pneg %p222
      $region30: #{tpu_custom_call.1} parent=5 // pred_check_branch
        %225 = sbr.rel (%p223) target = $region32
      $region31: #{tpu_custom_call.1} parent=5 // pred_region
        // Predicated region
        $region33: #{tpu_custom_call.1} parent=31 // pred_check
          %p226 = pneg %p49
        $region34: #{tpu_custom_call.1} parent=31 // pred_check_branch
          %228 = sbr.rel (%p226) target = $region36
        $region35: #{tpu_custom_call.1} parent=31 // pred_region
          %s229 = smul.u32 2, %s23
          %p230 = scmp.lt.s32.totalorder %s22, 1
          %s231 = scalar_select %p230, %s22, 1
          %p232 = scmp.lt.s32.totalorder %s229, 1
          %s233 = scalar_select %p232, %s229, 1
          %s234 = smul.addr %s231, 2
          %s235 = sadd.s32 %s233, %s234
          %s236 = smul.addr %s235, 4
          %s237 = scalar_lea.vmem %s0, %s236
          %s238 = smul.u32 2, %s23
        $region36: #{tpu_custom_call.1} parent=31 // pred_fallthru
          _
        // Predicated region
        $region37: #{tpu_custom_call.1} parent=31 // pred_check
          %p239 = pneg %p77
        $region38: #{tpu_custom_call.1} parent=31 // pred_check_branch
          %241 = sbr.rel (%p239) target = $region40
        $region39: #{tpu_custom_call.1} parent=31 // pred_region
          %p242 = scmp.lt.s32.totalorder %s22, 1
          %s243 = scalar_select %p242, %s22, 1
          %p244 = scmp.lt.s32.totalorder %s23, 0
          %s245 = scalar_select %p244, %s23, 0
          %s246 = smul.addr %s245, 4
          %s247 = smul.addr %s243, 4
          %s248 = sadd.s32 %s246, %s247
          %s249 = smul.addr %s248, 4
          %s250 = scalar_lea.vmem %s1, %s249
        $region40: #{tpu_custom_call.1} parent=31 // pred_fallthru
          _
      $region32: #{tpu_custom_call.1} parent=5 // pred_fallthru
        _
      %p251 = scmp.le.s32.totalorder 1, %s15
      %p252 = scmp.lt.s32.totalorder %s15, 3
      %p253 = pnand %p251, %p252
      %p254 = pneg %p253
      // Predicated region
      $region41: #{tpu_custom_call.1} parent=5 // pred_check
        _
      $region42: #{tpu_custom_call.1} parent=5 // pred_check_branch
        %256 = sbr.rel (%p253) target = $region44
      $region43: #{tpu_custom_call.1} parent=5 // pred_region
        %s257 = ssub.s32 %s15, 1
        %s258 = smul.u32 2, %s25
        %p259 = scmp.lt.s32.totalorder %s24, 1
        %s260 = scalar_select %p259, %s24, 1
        %p261 = scmp.lt.s32.totalorder %s258, 1
        %s262 = scalar_select %p261, %s258, 1
        %s263 = smul.addr %s260, 2
        %s264 = sadd.s32 %s262, %s263
        %s265 = smul.addr %s264, 4
        %s266 = scalar_lea.vmem %s0, %s265
        %p267 = pneg %p55
        %p268 = pneg %p52
        %p269 = scmp.lt.s32.totalorder %s24, 1
        %s270 = scalar_select %p269, %s24, 1
        %p271 = scmp.lt.s32.totalorder %s25, 0
        %s272 = scalar_select %p271, %s25, 0
        %s273 = smul.addr %s272, 4
        %s274 = smul.addr %s270, 4
        %s275 = sadd.s32 %s273, %s274
        %s276 = smul.addr %s275, 4
        %s277 = scalar_lea.vmem %s1, %s276
        %p278 = pneg %p83
        %p279 = pneg %p80
        %p280 = pneg %p104
        %p281 = pneg %p101
        %p282 = pneg %p125
        %p283 = pneg %p122
        %p284 = pneg %p146
        %p285 = pneg %p143
        %p286 = pneg %p167
        %p287 = pneg %p164
        %p288 = pneg %p195
        %p289 = pneg %p192
        %s290 = sand.u32 %s182, 1
        %s291 = scalar_lea.sflag [#allocation3], %s290
        %s292 = sand.u32 %s182, 1
        %s293 = smul.addr %s292, 8
        %s294 = scalar_lea.vmem [#allocation2], %s293
        %s295 = smul.u32 2, %s25
        %p296 = scmp.lt.s32.totalorder %s24, 1
        %s297 = scalar_select %p296, %s24, 1
        %p298 = scmp.lt.s32.totalorder %s295, 1
        %s299 = scalar_select %p298, %s295, 1
        %s300 = smul.addr %s297, 2
        %s301 = sadd.s32 %s299, %s300
        %s302 = smul.addr %s301, 4
        %s303 = scalar_lea.vmem %s0, %s302
        %s304 = smul.u32 2, %s25
        %p305 = scmp.lt.s32.totalorder %s24, 1
        %s306 = scalar_select %p305, %s24, 1
        %p307 = scmp.lt.s32.totalorder %s25, 0
        %s308 = scalar_select %p307, %s25, 0
        %s309 = smul.addr %s308, 4
        %s310 = smul.addr %s306, 4
        %s311 = sadd.s32 %s309, %s310
        %s312 = smul.addr %s311, 4
        %s313 = scalar_lea.vmem %s1, %s312
        %v315 = vld [vmem:[%s313] sm:$0xf]
        %v316 = vld [vmem:[%s313 + $0x4] sm:$0xf]
        %v317 = vld [vmem:[%s313 + $0x8] sm:$0xf]
        %v318 = vld [vmem:[%s313 + $0xc] sm:$0xf]
        %v319 = vld [vmem:[%s303] sm:$0xf]
        %v320 = vld [vmem:[%s303 + $0x4] sm:$0xf]
        %v323 = vunpack.c.l.b16 %v315
        %v324 = vunpack.c.l.b16 %v316
        %v325 = vpack.c.b16 %v324, %v323
        %v328 = vunpack.c.l.b16 %v319
        %v329 = vunpack.c.l.b16 %v320
        %v330 = vpack.c.b16 %v329, %v328
        %v333 = vunpack.c.l.b16 %v317
        %v334 = vunpack.c.l.b16 %v318
        %v335 = vpack.c.b16 %v334, %v333
        %vm336 = vsmask.f32 7424
        %v338 = vshrl.u32 %v325, 16
        %v340 = vshll.u32 %v325, 16
        %v342 = vrot.slane %v340, 1
        %v343 = vor.u32 %v338, %v342
        %v345 = vshll.u32 %v330, 16
        %v347 = vrot.slane %v345, 1
        %v348 = vsel %vm336, %v343, %v347
        %v349 = vshrl.u32 %v330, 16
        %v351 = vor.u32 %v349, %v347
        %v353 = vshll.u32 %v335, 16
        %v355 = vrot.slane %v353, 1
        %v356 = vsel %vm336, %v351, %v355
        %v357 = vshrl.u32 %v335, 16
        %359 = vrot.lane.b32.xlu0 %v348, 4
        %v360 = vpop.permute.xlu0 %359
        %361 = vrot.lane.b32.xlu0 %v356, 4
        %v362 = vpop.permute.xlu0 %361
        %363 = vrot.lane.b32.xlu0 %v357, 4
        %v364 = vpop.permute.xlu0 %363
        %vm365 = vcmask 1046528
        %v366 = vrot.slane %v325, 1
        %v367 = vrot.slane %v330, 1
        %v368 = vsel %vm365, %v366, %v367
        %v369 = vrot.slane %v335, 1
        %v370 = vsel %vm365, %v367, %v369
        %371 = vrot.lane.b32.xlu0 %v368, 8
        %v372 = vpop.permute.xlu0 %371
        %373 = vrot.lane.b32.xlu0 %v370, 8
        %v374 = vpop.permute.xlu0 %373
        %375 = vrot.lane.b32.xlu0 %v369, 8
        %v376 = vpop.permute.xlu0 %375
        %vm377 = vcmask 31744
        %v379 = vsel %vm377, %v325, %v360
        %v381 = vsel %vm377, %v330, %v362
        %v383 = vsel %vm377, %v335, %v364
        %vm384 = vcmask 64512
        %v386 = vsel %vm384, %v379, %v372
        %v388 = vsel %vm384, %v381, %v374
        %v390 = vsel %vm384, %v383, %v376
        %v391 = vld [vmem:[%s2] sm:$0xf]
        %v392 = vld [vmem:[%s2 + $0x4] sm:$0x3]
        %v393 = vld [vmem:[%s4] sm:$0x1]
        %v395 = vperm.slane %v393, 0
        %vm397 = vsmask.f32 1280
        %v398 = vshrl.u32 %v386, 16
        %v400 = vrot.slane %v398, 6
        %v401 = vshll.u32 %v386, 16
        %v403 = vrot.slane %v401, 7
        %v404 = vor.u32 %v400, %v403
        %v405 = vshrl.u32 %v388, 16
        %v407 = vrot.slane %v405, 6
        %v408 = vshll.u32 %v388, 16
        %v410 = vrot.slane %v408, 7
        %v411 = vor.u32 %v407, %v410
        %v412 = vsel %vm397, %v404, %v411
        %v413 = vshll.u32 %v390, 16
        %v415 = vrot.slane %v413, 7
        %v416 = vsel %vm397, %v411, %v415
        %v419 = vunpack.c.l.b16 %v391
        %v420 = vunpack.c.l.b16 %v392
        %v421 = vpack.c.b16 %v420, %v419
        %vm422 = vcmask 97280
        %v424 = vsel %vm422, %v412, 0
        %v427 = vsel %vm422, %v416, 0
        %vm429 = vcmask 1045504
        %v431 = vsel %vm429, %v421, 0
        %433 = vmatpush.bf16.msra.mxu0 0
        %434 = vmatpush.bf16.msra.mxu0 0
        %435 = vmatpush.bf16.msra.mxu0 0
        %436 = vmatpush.bf16.msra.mxu0 0
        %437 = vmatpush.bf16.msra.mxu0 0
        %438 = vmatpush.bf16.msra.mxu0 0
        %439 = vmatpush.bf16.msra.mxu0 0
        %440 = vmatpush.bf16.msra.mxu0 %v431
        %441 = vmatmul.bf16.gmra.mxu0 %v424
        %v442 = vpop.f32.mrf.mxu0
        %v443 = vadd.f32 %v395, %v442
        %v444 = vpop.f32.mrf.mxu0
        %v445 = vadd.f32 %v395, %v444
        %446 = vmatmul.bf16.gmra.mxu0 %v427
        %v447 = vpop.f32.mrf.mxu0
        %v448 = vadd.f32 %v395, %v447
        %v449 = vpop.f32.mrf.mxu0
        %450 = vdwg.mxu0
        %v451 = vmax.f32 %v443, 0.0
        %v452 = vmax.f32 %v445, 0.0
        %v453 = vmax.f32 %v448, 0.0
        %s454 = smul.u32 %s25, 16
        %s455 = ssub.s32 %s454, 2
        %v456 = vlaneseq
        %v457 = vshrl.u32 %v456, 7
        %v458 = vadd.s32 %v457, 8
        %v459 = vadd.s32 %v457, 16
        %v460 = vstv %s455
        %v461 = vadd.s32 %v460, %v457
        %v462 = vadd.s32 %v460, %v458
        %v463 = vadd.s32 %v460, %v459
        %vm464 = vcmp.ge.s32.totalorder %v461, 0
        %vm465 = vcmp.ge.s32.totalorder %v462, 0
        %vm466 = vcmp.ge.s32.totalorder %v463, 0
        %vm467 = vcmp.lt.s32.totalorder %v461, 16
        %vm468 = vcmp.lt.s32.totalorder %v462, 16
        %vm469 = vcmp.lt.s32.totalorder %v463, 16
        %vm470 = vmand %vm464, %vm467
        %vm471 = vmand %vm465, %vm468
        %vm472 = vmand %vm466, %vm469
        %v473 = vsel %vm470, 1, 0
        %v474 = vsel %vm471, 1, 0
        %v475 = vsel %vm472, 1, 0
        %vm476 = vcmp.eq.s32.totalorder %v473, 1
        %vm477 = vcmp.eq.s32.totalorder %v474, 1
        %vm478 = vcmp.eq.s32.totalorder %v475, 1
        %v479 = vsel %vm476, %v451, 0.0
        %v480 = vsel %vm477, %v452, 0.0
        %v481 = vsel %vm478, %v453, 0.0
        %v482 = vpack.c.bf16 %v479, %v479
        %v483 = vpack.c.bf16 %v480, %v480
        %v484 = vpack.c.bf16 %v481, %v481
        %v487 = vunpack.c.l.b16 %v482
        %v488 = vunpack.c.l.b16 %v483
        %v489 = vpack.c.b16 %v488, %v487
        %v491 = vunpack.c.l.b16 %v484
        %v492 = vpack.c.b16 %v491, %v491
        %v493 = vrot.slane %v489, 1
        %v494 = vrot.slane %v492, 1
        %v495 = vsel %vm365, %v493, %v494
        %496 = vrot.lane.b32.xlu0 %v495, 8
        %v497 = vpop.permute.xlu0 %496
        %vm498 = vcmask 1045504
        %v499 = vrot.slane %v489, 2
        %v500 = vrot.slane %v492, 2
        %v501 = vsel %vm498, %v499, %v500
        %502 = vrot.lane.b32.xlu0 %v501, 16
        %v503 = vpop.permute.xlu0 %502
        %v506 = vsel %vm384, %v489, %v497
        %vm507 = vcmask 130048
        %v509 = vsel %vm507, %v506, %v503
        %v510 = vld [vmem:[%s3] sm:$0xf]
        %v511 = vld [vmem:[%s3 + $0x4] sm:$0xf]
        %v512 = vld [vmem:[%s3 + $0x8] sm:$0xf]
        %v513 = vld [vmem:[%s5] sm:$0x1]
        %v515 = vperm.slane %v513, 0
        %v520 = vunpack.c.l.b16 %v510
        %v521 = vunpack.c.l.b16 %v511
        %v522 = vunpack.c.l.b16 %v512
        %v523 = vpack.c.b16 %v521, %v520
        %v524 = vpack.c.b16 %v522, %v522
        %vm526 = vcmask 195584
        %v527 = vsel %vm526, %v509, 0
        %vm529 = vcmask 1043456
        %v531 = vsel %vm529, %v524, 0
        %533 = vmatpush.bf16.msra.mxu0 0
        %534 = vmatpush.bf16.msra.mxu0 0
        %535 = vmatpush.bf16.msra.mxu0 0
        %536 = vmatpush.bf16.msra.mxu0 0
        %537 = vmatpush.bf16.msra.mxu0 0
        %538 = vmatpush.bf16.msra.mxu0 0
        %539 = vmatpush.bf16.msra.mxu0 %v531
        %540 = vmatpush.bf16.msra.mxu0 %v523
        %541 = vmatmul.bf16.gmra.mxu0 %v527
        %v542 = vpop.f32.mrf.mxu0
        %v543 = vadd.f32 %v515, %v542
        %v544 = vpop.f32.mrf.mxu0
        %v545 = vadd.f32 %v515, %v544
        %546 = vdwg.mxu0
        %v547 = vmax.f32 %v543, 0.0
        %v548 = vmax.f32 %v545, 0.0
        %v551 = vrot.slane %v547, 2
        %v552 = vrot.slane %v547, 4
        %v553 = vrot.slane %v547, 6
        %v554 = vrot.slane %v548, 2
        %v555 = vrot.slane %v548, 4
        %v556 = vrot.slane %v548, 6
        %vm563 = vcmask 58368
        %v564 = vsel %vm563, %v547, -inf
        %v565 = vrot.slane %v564, 4
        %v566 = vmax.f32 %v564, %v565
        %v567 = vrot.slane %v566, 2
        %v568 = vmax.f32 %v566, %v567
        %v569 = vrot.slane %v568, 1
        %v570 = vmax.f32 %v568, %v569
        %v571 = vsel %vm563, %v551, -inf
        %v572 = vrot.slane %v571, 4
        %v573 = vmax.f32 %v571, %v572
        %v574 = vrot.slane %v573, 2
        %v575 = vmax.f32 %v573, %v574
        %v576 = vrot.slane %v575, 1
        %v577 = vmax.f32 %v575, %v576
        %v578 = vsel %vm563, %v552, -inf
        %v579 = vrot.slane %v578, 4
        %v580 = vmax.f32 %v578, %v579
        %v581 = vrot.slane %v580, 2
        %v582 = vmax.f32 %v580, %v581
        %v583 = vrot.slane %v582, 1
        %v584 = vmax.f32 %v582, %v583
        %v585 = vsel %vm563, %v553, -inf
        %v586 = vrot.slane %v585, 4
        %v587 = vmax.f32 %v585, %v586
        %v588 = vrot.slane %v587, 2
        %v589 = vmax.f32 %v587, %v588
        %v590 = vrot.slane %v589, 1
        %v591 = vmax.f32 %v589, %v590
        %v592 = vsel %vm563, %v548, -inf
        %v593 = vrot.slane %v592, 4
        %v594 = vmax.f32 %v592, %v593
        %v595 = vrot.slane %v594, 2
        %v596 = vmax.f32 %v594, %v595
        %v597 = vrot.slane %v596, 1
        %v598 = vmax.f32 %v596, %v597
        %v599 = vsel %vm563, %v554, -inf
        %v600 = vrot.slane %v599, 4
        %v601 = vmax.f32 %v599, %v600
        %v602 = vrot.slane %v601, 2
        %v603 = vmax.f32 %v601, %v602
        %v604 = vrot.slane %v603, 1
        %v605 = vmax.f32 %v603, %v604
        %v606 = vsel %vm563, %v555, -inf
        %v607 = vrot.slane %v606, 4
        %v608 = vmax.f32 %v606, %v607
        %v609 = vrot.slane %v608, 2
        %v610 = vmax.f32 %v608, %v609
        %v611 = vrot.slane %v610, 1
        %v612 = vmax.f32 %v610, %v611
        %v613 = vsel %vm563, %v556, -inf
        %v614 = vrot.slane %v613, 4
        %v615 = vmax.f32 %v613, %v614
        %v616 = vrot.slane %v615, 2
        %v617 = vmax.f32 %v615, %v616
        %v618 = vrot.slane %v617, 1
        %v619 = vmax.f32 %v617, %v618
        %v620 = vlaneseq
        %v621 = vand.u32 %v620, 127
        %vm622 = vcmp.eq.s32.totalorder %v457, %v621
        %v623 = vsel %vm622, 1, 0
        %v624 = vcvt.s32.f32 %v623
        %v625 = vpack.c.bf16 %v624, %v624
        %v626 = vpack.c.bf16 %v570, %v570
        %v627 = vpack.c.bf16 %v577, %v577
        %v628 = vpack.c.bf16 %v584, %v584
        %v629 = vpack.c.bf16 %v591, %v591
        %v630 = vpack.c.bf16 %v598, %v598
        %v631 = vpack.c.bf16 %v605, %v605
        %v632 = vpack.c.bf16 %v612, %v612
        %v633 = vpack.c.bf16 %v619, %v619
        %v642 = vunpack.c.l.b16 %v626
        %v643 = vunpack.c.l.b16 %v627
        %v644 = vunpack.c.l.b16 %v628
        %v645 = vunpack.c.l.b16 %v629
        %v646 = vunpack.c.l.b16 %v630
        %v647 = vunpack.c.l.b16 %v631
        %v648 = vunpack.c.l.b16 %v632
        %v649 = vunpack.c.l.b16 %v633
        %vm650 = vcmask 1041409
        %v651 = vsel %vm650, %v643, %v642
        %vm652 = vcmask 1042434
        %v653 = vsel %vm652, %v644, %v651
        %vm654 = vcmask 1043459
        %v655 = vsel %vm654, %v645, %v653
        %vm656 = vcmask 1044484
        %v657 = vsel %vm656, %v646, %v655
        %vm658 = vcmask 1045509
        %v659 = vsel %vm658, %v647, %v657
        %vm660 = vcmask 1046534
        %v661 = vsel %vm660, %v648, %v659
        %vm662 = vcmask 1047559
        %v663 = vsel %vm662, %v649, %v661
        %v664 = vpack.c.b16 %v663, %v663
        %v666 = vsel %vm384, %v625, 0
        %v669 = vsel %vm384, %v664, 0
        %671 = vmatpush.bf16.xpose.msra.mxu0 0
        %672 = vmatpush.bf16.xpose.msra.mxu0 0
        %673 = vmatpush.bf16.xpose.msra.mxu0 0
        %674 = vmatpush.bf16.xpose.msra.mxu0 0
        %675 = vmatpush.bf16.xpose.msra.mxu0 0
        %676 = vmatpush.bf16.xpose.msra.mxu0 0
        %677 = vmatpush.bf16.xpose.msra.mxu0 0
        %678 = vmatpush.bf16.xpose.msra.mxu0 %v669
        %679 = vmatmul.bf16.gmra.mxu0 %v666
        %v680 = vpop.f32.mrf.mxu0
        %v681 = vadd.f32 0.0, %v680
        %v682 = vpop.f32.mrf.mxu0
        %683 = vdwg.mxu0
        %684 = vst.msk [vmem:[%s294] sm:$0xff] %vm384, %v681
        %s685 = sand.u32 %s182, 1
        %s686 = scalar_lea.sflag [#allocation3], %s685
        %s687 = sand.u32 %s182, 1
        %s688 = smul.addr %s687, 8
        %s689 = scalar_lea.vmem [#allocation2], %s688
        // Predicated region
        $region45: #{tpu_custom_call.1} parent=43 // pred_check
          %p690 = pneg %p192
        $region46: #{tpu_custom_call.1} parent=43 // pred_check_branch
          %692 = sbr.rel (%p690) target = $region48
        $region47: #{tpu_custom_call.1} parent=43 // pred_region
          %694 = vsyncadd %s686, 0
          %s695 = sadd.s32 %s25, %s24
          %s696 = smul.addr %s695, 8
          %s697 = scalar_lea.hbm %s6, %s696
          %s699 = sshll.u32 %s689, 4
          %s700 = int_to_ptr.vmem [resolvable:$true] %s699
          %s701 = sshll.u32 %s697, 4
          %s702 = int_to_ptr.hbm [resolvable:$true] %s701
          %704 = dma.vmem_to_hbm [thread:$0]  %s700, 128, %s702, %s686
        $region48: #{tpu_custom_call.1} parent=43 // pred_fallthru
          _
      $region44: #{tpu_custom_call.1} parent=5 // pred_fallthru
        _
      %p705 = scmp.le.s32.totalorder 2, %s15
      // Predicated region
      $region49: #{tpu_custom_call.1} parent=5 // pred_check
        %p706 = pneg %p705
      $region50: #{tpu_custom_call.1} parent=5 // pred_check_branch
        %708 = sbr.rel (%p706) target = $region52
      $region51: #{tpu_custom_call.1} parent=5 // pred_region
        %s709 = ssub.s32 %s15, 2
        // Predicated region
        $region53: #{tpu_custom_call.1} parent=51 // pred_check
          %p710 = pneg %p198
        $region54: #{tpu_custom_call.1} parent=51 // pred_check_branch
          %712 = sbr.rel (%p710) target = $region56
        $region55: #{tpu_custom_call.1} parent=51 // pred_region
          %s713 = sand.u32 %s183, 1
          %s714 = scalar_lea.sflag [#allocation3], %s713
          %s715 = sand.u32 %s183, 1
          %s716 = smul.addr %s715, 8
          %s717 = scalar_lea.vmem [#allocation2], %s716
          %719 = dma.done %s714, 128
        $region56: #{tpu_custom_call.1} parent=51 // pred_fallthru
          _
      $region52: #{tpu_custom_call.1} parent=5 // pred_fallthru
        _
    $region6: #{tpu_custom_call.1} parent=1 // loop_footer
      %s19 = sadd.s32 1, %s15
    $region7: #{tpu_custom_call.1} parent=1 // loop_footer_branch
      %14 = sbr.rel target = $region3
    $region8: #{tpu_custom_call.1} parent=1 // loop_exit
      _
    %720 = vsyncpa [#allocation3], 1
    %s721 = scalar_lea.sflag [#allocation3], 1
    %722 = vsyncpa %s721, 1

</llo_original>
